<compile_context>
chip_gen: v7x
topology: tpu7x:2x2x1
jax: 0.10.0
libtpu: 0.0.40
codegen_flags: <defaults>
</compile_context>

<pallas_src>
import functools

import jax
import jax.numpy as jnp
from jax.experimental import pallas as pl
from jax.experimental.pallas import tpu as pltpu


# ------------------------------ fused kernel ------------------------------- #
def _critic_kernel(s_ref, a_ref,
                   w1s_ref, w1a_ref, b1_ref,
                   w2_ref, b2_ref,
                   w3_ref, b3_ref,
                   w4_ref, b4_ref,
                   o_ref):
    # Grid axis 0 selects which twin network's (stacked) parameters we see.
    s = s_ref[...]                       # (B, Ds)
    a = a_ref[...]                       # (B, Da)

    # Layer 1:  cat(s, a) @ W1 + b1  ==  s @ W1s + a @ W1a + b1
    h = (jnp.dot(s, w1s_ref[0], preferred_element_type=jnp.float32)
         + jnp.dot(a, w1a_ref[0], preferred_element_type=jnp.float32)
         + b1_ref[0])
    h = jnp.maximum(h, 0.0)

    # Layer 2
    h = jnp.dot(h, w2_ref[0], preferred_element_type=jnp.float32) + b2_ref[0]
    h = jnp.maximum(h, 0.0)

    # Layer 3
    h = jnp.dot(h, w3_ref[0], preferred_element_type=jnp.float32) + b3_ref[0]
    h = jnp.maximum(h, 0.0)

    # Layer 4 (output padded to 128 lanes -> unmasked, lane-dense store)
    q = jnp.dot(h, w4_ref[0], preferred_element_type=jnp.float32) + b4_ref[0]

    o_ref[0] = q.astype(o_ref.dtype)     # (B, 128)


# -------------------------------- wrapper ----------------------------------- #
@jax.jit
def critic_forward(params, state, action):
    """state: (B, linear_output + 2); action: (B, act_size).

    Returns (q1, q2), each of shape (B, 1), matching Critic.forward.
    """
    B, Ds = state.shape
    Da = action.shape[1]
    H = params["w2"].shape[1]

    out = pl.pallas_call(
        _critic_kernel,
        out_shape=jax.ShapeDtypeStruct((2, B, 128), jnp.float32),
        grid=(2,),                                     # one step per twin net
        in_specs=[
            pl.BlockSpec((B, Ds), lambda n: (0, 0)),           # state (shared)
            pl.BlockSpec((B, Da), lambda n: (0, 0)),           # action (shared)
            pl.BlockSpec((1, Ds, H), lambda n: (n, 0, 0)),     # W1 (state part)
            pl.BlockSpec((1, Da, H), lambda n: (n, 0, 0)),     # W1 (action part)
            pl.BlockSpec((1, 1, H), lambda n: (n, 0, 0)),      # b1
            pl.BlockSpec((1, H, H), lambda n: (n, 0, 0)),      # W2
            pl.BlockSpec((1, 1, H), lambda n: (n, 0, 0)),      # b2
            pl.BlockSpec((1, H, H), lambda n: (n, 0, 0)),      # W3
            pl.BlockSpec((1, 1, H), lambda n: (n, 0, 0)),      # b3
            pl.BlockSpec((1, H, 128), lambda n: (n, 0, 0)),    # W4 (padded)
            pl.BlockSpec((1, 1, 128), lambda n: (n, 0, 0)),    # b4 (padded)
        ],
        out_specs=pl.BlockSpec((1, B, 128), lambda n: (n, 0, 0)),
        compiler_params=pltpu.CompilerParams(
            dimension_semantics=("parallel",)),        # v7x: one net per TC
    )(state, action,
      params["w1s"], params["w1a"], params["b1"],
      params["w2"], params["b2"],
      params["w3"], params["b3"],
      params["w4"], params["b4"])

    q1 = out[0, :, :1]
    q2 = out[1, :, :1]
    return q1, q2


# --------------------------- parameter preparation -------------------------- #
def init_params(key, linear_output, hidden_size, act_size, init_w=0.003):
    """Kernel-ready parameters, stacked over the two twin networks.

    Weights are stored as (2, in_features, out_features); the first layer is
    pre-split into state / action parts; the last layer is pre-padded to 128
    output lanes. All layout work is done here, once, not in the forward pass.
    """
    ds = linear_output + 2
    da = act_size
    din = ds + da
    h = hidden_size
    ks = jax.random.split(key, 8)

    def lin(kw, kb, fan_in, fan_out):
        bound = 1.0 / (float(fan_in) ** 0.5)   # PyTorch nn.Linear default init
        w = jax.random.uniform(kw, (2, fan_in, fan_out), jnp.float32,
                               -bound, bound)
        b = jax.random.uniform(kb, (2, 1, fan_out), jnp.float32, -bound, bound)
        return w, b

    w1, b1 = lin(ks[0], ks[1], din, h)
    w2, b2 = lin(ks[2], ks[3], h, h)
    w3, b3 = lin(ks[4], ks[5], h, h)
    # Last layer of MLP: weight/bias ~ U(-init_w, init_w), out_features = 1.
    w4 = jax.random.uniform(ks[6], (2, h, 1), jnp.float32, -init_w, init_w)
    b4 = jax.random.uniform(ks[7], (2, 1, 1), jnp.float32, -init_w, init_w)

    return {
        "w1s": w1[:, :ds, :],                          # (2, Ds, H)
        "w1a": w1[:, ds:, :],                          # (2, Da, H)
        "b1": b1,                                      # (2, 1, H)
        "w2": w2, "b2": b2,
        "w3": w3, "b3": b3,
        "w4": jnp.pad(w4, ((0, 0), (0, 0), (0, 127))),  # (2, H, 128)
        "b4": jnp.pad(b4, ((0, 0), (0, 0), (0, 127))),  # (2, 1, 128)
    }


# ------------------------------ pure-JAX reference -------------------------- #
def critic_ref(params, state, action):
    sa = jnp.concatenate([state, action], axis=1)
    w1 = jnp.concatenate([params["w1s"], params["w1a"]], axis=1)
    qs = []
    for n in range(2):
        x = jnp.maximum(sa @ w1[n] + params["b1"][n], 0.0)
        x = jnp.maximum(x @ params["w2"][n] + params["b2"][n], 0.0)
        x = jnp.maximum(x @ params["w3"][n] + params["b3"][n], 0.0)
        q = x @ params["w4"][n][:, :1] + params["b4"][n][:, :1]
        qs.append(q)
    return tuple(qs)


if __name__ == "__main__":
    # Small shapes consistent with Critic(linear_output, hidden_size, act_size)
    linear_output = 16
    hidden_size = 32
    act_size = 4
    batch = 2

    key = jax.random.PRNGKey(0)
    k_param, k_s, k_a = jax.random.split(key, 3)
    params = init_params(k_param, linear_output, hidden_size, act_size)
    state = jax.random.normal(k_s, (batch, linear_output + 2), jnp.float32)
    action = jax.random.normal(k_a, (batch, act_size), jnp.float32)

    q1, q2 = critic_forward(params, state, action)
    q1, q2 = jax.block_until_ready((q1, q2))

    assert q1.shape == (batch, 1) and q2.shape == (batch, 1), (q1.shape, q2.shape)
    assert jnp.isfinite(q1).all() and jnp.isfinite(q2).all()

    r1, r2 = critic_ref(params, state, action)
    assert jnp.allclose(q1, r1, rtol=5e-3, atol=5e-3), (q1, r1)
    assert jnp.allclose(q2, r2, rtol=5e-3, atol=5e-3), (q2, r2)

    print("KERNEL_OK")
</pallas_src>

<mosaic_0001>
module attributes {stable_mosaic.version = 11 : i64} {
  func.func @_critic_kernel(%arg0: i32, %arg1: memref<2x18xf32, #tpu.memory_space<vmem>>, %arg2: memref<2x4xf32, #tpu.memory_space<vmem>>, %arg3: memref<1x18x32xf32, #tpu.memory_space<vmem>>, %arg4: memref<1x4x32xf32, #tpu.memory_space<vmem>>, %arg5: memref<1x1x32xf32, #tpu.memory_space<vmem>>, %arg6: memref<1x32x32xf32, #tpu.memory_space<vmem>>, %arg7: memref<1x1x32xf32, #tpu.memory_space<vmem>>, %arg8: memref<1x32x32xf32, #tpu.memory_space<vmem>>, %arg9: memref<1x1x32xf32, #tpu.memory_space<vmem>>, %arg10: memref<1x32x128xf32, #tpu.memory_space<vmem>>, %arg11: memref<1x1x128xf32, #tpu.memory_space<vmem>>, %arg12: memref<1x2x128xf32, #tpu.memory_space<vmem>>) attributes {dimension_semantics = [#tpu.dimension_semantics<parallel>], iteration_bounds = array<i64: 2>, scalar_prefetch = 0 : i64, scratch_operands = 0 : i64, tpu.core_type = #tpu.core_type<tc>, window_params = [{pipeline_mode = #tpu.pipeline_mode<synchronous>, transform_indices = @transform_0, window_bounds = array<i64: 2, 18>}, {pipeline_mode = #tpu.pipeline_mode<synchronous>, transform_indices = @transform_1, window_bounds = array<i64: 2, 4>}, {transform_indices = @transform_2, window_bounds = array<i64: 1, 18, 32>}, {transform_indices = @transform_3, window_bounds = array<i64: 1, 4, 32>}, {transform_indices = @transform_4, window_bounds = array<i64: 1, 1, 32>}, {transform_indices = @transform_5, window_bounds = array<i64: 1, 32, 32>}, {transform_indices = @transform_6, window_bounds = array<i64: 1, 1, 32>}, {transform_indices = @transform_7, window_bounds = array<i64: 1, 32, 32>}, {transform_indices = @transform_8, window_bounds = array<i64: 1, 1, 32>}, {transform_indices = @transform_9, window_bounds = array<i64: 1, 32, 128>}, {transform_indices = @transform_10, window_bounds = array<i64: 1, 1, 128>}, {transform_indices = @transform_11, window_bounds = array<i64: 1, 2, 128>}]} {
    %c0 = arith.constant 0 : index
    %c0_0 = arith.constant 0 : index
    %0 = vector.load %arg1[%c0, %c0_0] : memref<2x18xf32, #tpu.memory_space<vmem>>, vector<2x18xf32>
    %c0_1 = arith.constant 0 : index
    %c0_2 = arith.constant 0 : index
    %1 = vector.load %arg2[%c0_1, %c0_2] : memref<2x4xf32, #tpu.memory_space<vmem>>, vector<2x4xf32>
    %c0_3 = arith.constant 0 : index
    %c0_4 = arith.constant 0 : index
    %c0_5 = arith.constant 0 : index
    %2 = vector.load %arg3[%c0_3, %c0_4, %c0_5] : memref<1x18x32xf32, #tpu.memory_space<vmem>>, vector<1x18x32xf32>
    %3 = vector.shape_cast %2 : vector<1x18x32xf32> to vector<18x32xf32>
    %cst = arith.constant dense<0.000000e+00> : vector<2x32xf32>
    %4 = tpu.matmul %0, %3, %cst {dimension_numbers = #tpu.dot_dimension_numbers<[1], [0], [0], [1], [0, 0, 1, 1], [], []>} : vector<2x18xf32>, vector<18x32xf32>, vector<2x32xf32> -> vector<2x32xf32>
    %c0_6 = arith.constant 0 : index
    %c0_7 = arith.constant 0 : index
    %c0_8 = arith.constant 0 : index
    %5 = vector.load %arg4[%c0_6, %c0_7, %c0_8] : memref<1x4x32xf32, #tpu.memory_space<vmem>>, vector<1x4x32xf32>
    %6 = vector.shape_cast %5 : vector<1x4x32xf32> to vector<4x32xf32>
    %cst_9 = arith.constant dense<0.000000e+00> : vector<2x32xf32>
    %7 = tpu.matmul %1, %6, %cst_9 {dimension_numbers = #tpu.dot_dimension_numbers<[1], [0], [0], [1], [0, 0, 1, 1], [], []>} : vector<2x4xf32>, vector<4x32xf32>, vector<2x32xf32> -> vector<2x32xf32>
    %8 = arith.addf %4, %7 : vector<2x32xf32>
    %c0_10 = arith.constant 0 : index
    %c0_11 = arith.constant 0 : index
    %c0_12 = arith.constant 0 : index
    %9 = vector.load %arg5[%c0_10, %c0_11, %c0_12] : memref<1x1x32xf32, #tpu.memory_space<vmem>>, vector<1x1x32xf32>
    %10 = vector.shape_cast %9 : vector<1x1x32xf32> to vector<1x32xf32>
    %11 = vector.broadcast %10 : vector<1x32xf32> to vector<2x32xf32>
    %12 = arith.addf %8, %11 : vector<2x32xf32>
    %cst_13 = arith.constant 0.000000e+00 : f32
    %13 = vector.broadcast %cst_13 : f32 to vector<2x32xf32>
    %14 = arith.maximumf %12, %13 : vector<2x32xf32>
    %c0_14 = arith.constant 0 : index
    %c0_15 = arith.constant 0 : index
    %c0_16 = arith.constant 0 : index
    %15 = vector.load %arg6[%c0_14, %c0_15, %c0_16] : memref<1x32x32xf32, #tpu.memory_space<vmem>>, vector<1x32x32xf32>
    %16 = vector.shape_cast %15 : vector<1x32x32xf32> to vector<32x32xf32>
    %cst_17 = arith.constant dense<0.000000e+00> : vector<2x32xf32>
    %17 = tpu.matmul %14, %16, %cst_17 {dimension_numbers = #tpu.dot_dimension_numbers<[1], [0], [0], [1], [0, 0, 1, 1], [], []>} : vector<2x32xf32>, vector<32x32xf32>, vector<2x32xf32> -> vector<2x32xf32>
    %c0_18 = arith.constant 0 : index
    %c0_19 = arith.constant 0 : index
    %c0_20 = arith.constant 0 : index
    %18 = vector.load %arg7[%c0_18, %c0_19, %c0_20] : memref<1x1x32xf32, #tpu.memory_space<vmem>>, vector<1x1x32xf32>
    %19 = vector.shape_cast %18 : vector<1x1x32xf32> to vector<1x32xf32>
    %20 = vector.broadcast %19 : vector<1x32xf32> to vector<2x32xf32>
    %21 = arith.addf %17, %20 : vector<2x32xf32>
    %cst_21 = arith.constant 0.000000e+00 : f32
    %22 = vector.broadcast %cst_21 : f32 to vector<2x32xf32>
    %23 = arith.maximumf %21, %22 : vector<2x32xf32>
    %c0_22 = arith.constant 0 : index
    %c0_23 = arith.constant 0 : index
    %c0_24 = arith.constant 0 : index
    %24 = vector.load %arg8[%c0_22, %c0_23, %c0_24] : memref<1x32x32xf32, #tpu.memory_space<vmem>>, vector<1x32x32xf32>
    %25 = vector.shape_cast %24 : vector<1x32x32xf32> to vector<32x32xf32>
    %cst_25 = arith.constant dense<0.000000e+00> : vector<2x32xf32>
    %26 = tpu.matmul %23, %25, %cst_25 {dimension_numbers = #tpu.dot_dimension_numbers<[1], [0], [0], [1], [0, 0, 1, 1], [], []>} : vector<2x32xf32>, vector<32x32xf32>, vector<2x32xf32> -> vector<2x32xf32>
    %c0_26 = arith.constant 0 : index
    %c0_27 = arith.constant 0 : index
    %c0_28 = arith.constant 0 : index
    %27 = vector.load %arg9[%c0_26, %c0_27, %c0_28] : memref<1x1x32xf32, #tpu.memory_space<vmem>>, vector<1x1x32xf32>
    %28 = vector.shape_cast %27 : vector<1x1x32xf32> to vector<1x32xf32>
    %29 = vector.broadcast %28 : vector<1x32xf32> to vector<2x32xf32>
    %30 = arith.addf %26, %29 : vector<2x32xf32>
    %cst_29 = arith.constant 0.000000e+00 : f32
    %31 = vector.broadcast %cst_29 : f32 to vector<2x32xf32>
    %32 = arith.maximumf %30, %31 : vector<2x32xf32>
    %c0_30 = arith.constant 0 : index
    %c0_31 = arith.constant 0 : index
    %c0_32 = arith.constant 0 : index
    %33 = vector.load %arg10[%c0_30, %c0_31, %c0_32] : memref<1x32x128xf32, #tpu.memory_space<vmem>>, vector<1x32x128xf32>
    %34 = vector.shape_cast %33 : vector<1x32x128xf32> to vector<32x128xf32>
    %cst_33 = arith.constant dense<0.000000e+00> : vector<2x128xf32>
    %35 = tpu.matmul %32, %34, %cst_33 {dimension_numbers = #tpu.dot_dimension_numbers<[1], [0], [0], [1], [0, 0, 1, 1], [], []>} : vector<2x32xf32>, vector<32x128xf32>, vector<2x128xf32> -> vector<2x128xf32>
    %c0_34 = arith.constant 0 : index
    %c0_35 = arith.constant 0 : index
    %c0_36 = arith.constant 0 : index
    %36 = vector.load %arg11[%c0_34, %c0_35, %c0_36] : memref<1x1x128xf32, #tpu.memory_space<vmem>>, vector<1x1x128xf32>
    %37 = vector.shape_cast %36 : vector<1x1x128xf32> to vector<1x128xf32>
    %38 = vector.broadcast %37 : vector<1x128xf32> to vector<2x128xf32>
    %39 = arith.addf %35, %38 : vector<2x128xf32>
    %c0_37 = arith.constant 0 : index
    %c0_38 = arith.constant 0 : index
    %c0_39 = arith.constant 0 : index
    %40 = vector.load %arg12[%c0_37, %c0_38, %c0_39] : memref<1x2x128xf32, #tpu.memory_space<vmem>>, vector<1x2x128xf32>
    %41 = vector.shape_cast %40 : vector<1x2x128xf32> to vector<2x128xf32>
    %42 = vector.shape_cast %39 : vector<2x128xf32> to vector<1x2x128xf32>
    tpu.vector_store %arg12[%c0_37, %c0_38, %c0_39], %42 {strides = array<i32>} : memref<1x2x128xf32, #tpu.memory_space<vmem>>, vector<1x2x128xf32>,
    return
  }
  func.func @transform_0(%arg0: i32) -> (i32, i32) {
    %c0_i32 = arith.constant 0 : i32
    %c0_i32_0 = arith.constant 0 : i32
    %c0_i32_1 = arith.constant 0 : i32
    return %c0_i32, %c0_i32_0 : i32, i32
  }
  func.func @transform_1(%arg0: i32) -> (i32, i32) {
    %c0_i32 = arith.constant 0 : i32
    %c0_i32_0 = arith.constant 0 : i32
    %c0_i32_1 = arith.constant 0 : i32
    return %c0_i32, %c0_i32_0 : i32, i32
  }
  func.func @transform_2(%arg0: i32) -> (i32, i32, i32) {
    %c0_i32 = arith.constant 0 : i32
    %c0_i32_0 = arith.constant 0 : i32
    %c0_i32_1 = arith.constant 0 : i32
    return %arg0, %c0_i32, %c0_i32_0 : i32, i32, i32
  }
  func.func @transform_3(%arg0: i32) -> (i32, i32, i32) {
    %c0_i32 = arith.constant 0 : i32
    %c0_i32_0 = arith.constant 0 : i32
    %c0_i32_1 = arith.constant 0 : i32
    return %arg0, %c0_i32, %c0_i32_0 : i32, i32, i32
  }
  func.func @transform_4(%arg0: i32) -> (i32, i32, i32) {
    %c0_i32 = arith.constant 0 : i32
    %c0_i32_0 = arith.constant 0 : i32
    %c0_i32_1 = arith.constant 0 : i32
    return %arg0, %c0_i32, %c0_i32_0 : i32, i32, i32
  }
  func.func @transform_5(%arg0: i32) -> (i32, i32, i32) {
    %c0_i32 = arith.constant 0 : i32
    %c0_i32_0 = arith.constant 0 : i32
    %c0_i32_1 = arith.constant 0 : i32
    return %arg0, %c0_i32, %c0_i32_0 : i32, i32, i32
  }
  func.func @transform_6(%arg0: i32) -> (i32, i32, i32) {
    %c0_i32 = arith.constant 0 : i32
    %c0_i32_0 = arith.constant 0 : i32
    %c0_i32_1 = arith.constant 0 : i32
    return %arg0, %c0_i32, %c0_i32_0 : i32, i32, i32
  }
  func.func @transform_7(%arg0: i32) -> (i32, i32, i32) {
    %c0_i32 = arith.constant 0 : i32
    %c0_i32_0 = arith.constant 0 : i32
    %c0_i32_1 = arith.constant 0 : i32
    return %arg0, %c0_i32, %c0_i32_0 : i32, i32, i32
  }
  func.func @transform_8(%arg0: i32) -> (i32, i32, i32) {
    %c0_i32 = arith.constant 0 : i32
    %c0_i32_0 = arith.constant 0 : i32
    %c0_i32_1 = arith.constant 0 : i32
    return %arg0, %c0_i32, %c0_i32_0 : i32, i32, i32
  }
  func.func @transform_9(%arg0: i32) -> (i32, i32, i32) {
    %c0_i32 = arith.constant 0 : i32
    %c0_i32_0 = arith.constant 0 : i32
    %c0_i32_1 = arith.constant 0 : i32
    return %arg0, %c0_i32, %c0_i32_0 : i32, i32, i32
  }
  func.func @transform_10(%arg0: i32) -> (i32, i32, i32) {
    %c0_i32 = arith.constant 0 : i32
    %c0_i32_0 = arith.constant 0 : i32
    %c0_i32_1 = arith.constant 0 : i32
    return %arg0, %c0_i32, %c0_i32_0 : i32, i32, i32
  }
  func.func @transform_11(%arg0: i32) -> (i32, i32, i32) {
    %c0_i32 = arith.constant 0 : i32
    %c0_i32_0 = arith.constant 0 : i32
    %c0_i32_1 = arith.constant 0 : i32
    return %arg0, %c0_i32, %c0_i32_0 : i32, i32, i32
  }
}

</mosaic_0001>

<llo_original>
// kernel: critic_forward.1
$region0: #{critic_forward.1}
  #allocation0 [shape = 'u32[]', space=smem, size = 0x4, offset = 0x4, fixed_abs, tag = 'smem constant byte address 0x4 - core index']
  #allocation1 [shape = 'u32[144,128]{1,0:T(1,128)}', space=vmem, size = 0x12000, scoped, tag = 'internal scratch']
  %s0 = inlined_call_operand.vmem [shape: f32[2,18], index: 0, kind: input, shape index: {}]
  %s1 = inlined_call_operand.vmem [shape: f32[2,4], index: 1, kind: input, shape index: {}]
  %s2 = inlined_call_operand.vmem [shape: f32[2,18,32], index: 2, kind: input, shape index: {}]
  %s3 = inlined_call_operand.vmem [shape: f32[2,4,32], index: 3, kind: input, shape index: {}]
  %s4 = inlined_call_operand.vmem [shape: f32[2,1,32], index: 4, kind: input, shape index: {}]
  %s5 = inlined_call_operand.vmem [shape: f32[2,32,32], index: 5, kind: input, shape index: {}]
  %s6 = inlined_call_operand.vmem [shape: f32[2,1,32], index: 6, kind: input, shape index: {}]
  %s7 = inlined_call_operand.hbm [shape: f32[2,32,32], index: 7, kind: input, shape index: {}]
  %s8 = inlined_call_operand.vmem [shape: f32[2,1,32], index: 8, kind: input, shape index: {}]
  %s9 = inlined_call_operand.hbm [shape: f32[2,32,128], index: 9, kind: input, shape index: {}]
  %s10 = inlined_call_operand.vmem [shape: f32[2,1,128], index: 10, kind: input, shape index: {}]
  %s11 = inlined_call_operand.vmem [shape: f32[2,2,128], index: 11, kind: output, shape index: {}]
  %s12 = sld [smem:[#allocation0]]
  $region85: #{critic_forward.1} parent=0
    _
  %s14 = ssub.s32 1, %s12
  %s15 = scalar_select 0, %s14, %s12
  $region1: #{critic_forward.1} parent=0
    #allocation2 [shape = 'u8[32768]{0}', space=vmem, size = 0x8000, scoped, tag = 'input window, operand 7']
    #allocation3 [shape = 's32[2]{0}', space=sflag, size = 0x8, scoped, tag = 'scoped memory for critic_forward.1']
    #allocation4 [shape = 'u8[32768]{0}', space=vmem, size = 0x8000, scoped, tag = 'input window, operand 9']
    #allocation5 [shape = 's32[2]{0}', space=sflag, size = 0x8, scoped, tag = 'scoped memory for critic_forward.1']
    %16 = vsyncpa [#allocation3], 0
    %s17 = scalar_lea.sflag [#allocation3], 1
    %18 = vsyncpa %s17, 0
    %19 = vsyncpa [#allocation5], 0
    %s20 = scalar_lea.sflag [#allocation5], 1
    %21 = vsyncpa %s20, 0
    loop: start=0, step=1, limit=4
    $region2: #{critic_forward.1} parent=1 // loop_pre_header
      _
    $region3: #{critic_forward.1} parent=1 // loop_header
      %s23 = sphi 0, %s27
      %p24 = scmp.ge.s32.totalorder %s23, 4
      %s31 = sphi 0, %s31
      %s33 = sphi 0, %s31
      %s34 = sphi 0, %s33
      %s48 = sphi 0, %s34
      %s52 = sphi 0, %s52
      %s54 = sphi 0, %s52
      %s55 = sphi 0, %s54
      %s69 = sphi 0, %s55
      %s75 = sphi 0, %s77
      %s78 = sphi 0, %s75
      %s79 = sphi 0, %s78
      %s95 = sphi 0, %s79
      %s101 = sphi 0, %s103
      %s104 = sphi 0, %s101
      %s105 = sphi 0, %s104
      %s121 = sphi 0, %s105
      %s127 = sphi 0, %s129
      %s130 = sphi 0, %s127
      %s131 = sphi 0, %s130
      %s147 = sphi 0, %s131
      %s153 = sphi 0, %s155
      %s156 = sphi 0, %s153
      %s157 = sphi 0, %s156
      %s173 = sphi 0, %s157
      %s179 = sphi 0, %s181
      %s182 = sphi 0, %s179
      %s183 = sphi 0, %s182
      %s199 = sphi 0, %s183
      %s205 = sphi 0, %s207
      %s208 = sphi 0, %s205
      %s209 = sphi 0, %s208
      %s225 = sphi 0, %s209
      %s231 = sphi 0, %s233
      %s234 = sphi 0, %s231
      %s235 = sphi 0, %s234
      %s251 = sphi 0, %s235
      %s257 = sphi 0, %s259
      %s260 = sphi 0, %s257
      %s261 = sphi 0, %s260
      %s277 = sphi 0, %s261
      %s283 = sphi 0, %s285
      %s286 = sphi 0, %s283
      %s287 = sphi 0, %s286
      %s303 = sphi 0, %s287
      %s309 = sphi 0, %s311
      %s312 = sphi 0, %s309
      %s313 = sphi 0, %s312
      %s329 = sphi 0, %s313
    $region4: #{critic_forward.1} parent=1 // loop_header_branch
      %26 = sbr.rel (%p24) target = $region8
    $region5: #{critic_forward.1} parent=1 // loop_body
      %s28 = ssub.s32 %s23, 1
      %s29 = ssub.s32 %s23, 2
      %s30 = sadd.s32 %s23, 1
      %s32 = sadd.s32 %s31, 1
      %p35 = scmp.eq.s32.totalorder %s23, 1
      %p36 = scmp.ne.s32.totalorder %s31, %s33
      %p37 = scmp.eq.s32.totalorder %s23, 0
      %p38 = por %p36, %p37
      %p39 = scmp.ne.s32.totalorder %s31, %s33
      %p40 = scmp.eq.s32.totalorder %s28, 1
      %p41 = por %p39, %p40
      %p42 = scmp.ne.s32.totalorder %s33, %s34
      %p43 = scmp.eq.s32.totalorder %s28, 0
      %p44 = por %p42, %p43
      %p45 = scmp.ne.s32.totalorder %s33, %s34
      %p46 = scmp.eq.s32.totalorder %s29, 1
      %p47 = por %p45, %p46
      %p49 = scmp.ne.s32.totalorder %s34, %s48
      %p50 = scmp.eq.s32.totalorder %s29, 0
      %p51 = por %p49, %p50
      %s53 = sadd.s32 %s52, 1
      %p56 = scmp.eq.s32.totalorder %s23, 1
      %p57 = scmp.ne.s32.totalorder %s52, %s54
      %p58 = scmp.eq.s32.totalorder %s23, 0
      %p59 = por %p57, %p58
      %p60 = scmp.ne.s32.totalorder %s52, %s54
      %p61 = scmp.eq.s32.totalorder %s28, 1
      %p62 = por %p60, %p61
      %p63 = scmp.ne.s32.totalorder %s54, %s55
      %p64 = scmp.eq.s32.totalorder %s28, 0
      %p65 = por %p63, %p64
      %p66 = scmp.ne.s32.totalorder %s54, %s55
      %p67 = scmp.eq.s32.totalorder %s29, 1
      %p68 = por %p66, %p67
      %p70 = scmp.ne.s32.totalorder %s55, %s69
      %p71 = scmp.eq.s32.totalorder %s29, 0
      %p72 = por %p70, %p71
      %s73 = ssub.s32 %s23, %s30
      %p74 = scmp.eq.s32.totalorder %s73, 0
      %s76 = sadd.s32 %s75, 1
      %s77 = scalar_select %p74, %s75, %s76
      %p80 = pneg %p74
      %p81 = scmp.eq.s32.totalorder %s23, 1
      %p82 = por %p80, %p81
      %p83 = scmp.ne.s32.totalorder %s75, %s78
      %p84 = scmp.eq.s32.totalorder %s23, 0
      %p85 = por %p83, %p84
      %p86 = scmp.ne.s32.totalorder %s75, %s78
      %p87 = scmp.eq.s32.totalorder %s28, 1
      %p88 = por %p86, %p87
      %p89 = scmp.ne.s32.totalorder %s78, %s79
      %p90 = scmp.eq.s32.totalorder %s28, 0
      %p91 = por %p89, %p90
      %p92 = scmp.ne.s32.totalorder %s78, %s79
      %p93 = scmp.eq.s32.totalorder %s29, 1
      %p94 = por %p92, %p93
      %p96 = scmp.ne.s32.totalorder %s79, %s95
      %p97 = scmp.eq.s32.totalorder %s29, 0
      %p98 = por %p96, %p97
      %s99 = ssub.s32 %s23, %s30
      %p100 = scmp.eq.s32.totalorder %s99, 0
      %s102 = sadd.s32 %s101, 1
      %s103 = scalar_select %p100, %s101, %s102
      %p106 = pneg %p100
      %p107 = scmp.eq.s32.totalorder %s23, 1
      %p108 = por %p106, %p107
      %p109 = scmp.ne.s32.totalorder %s101, %s104
      %p110 = scmp.eq.s32.totalorder %s23, 0
      %p111 = por %p109, %p110
      %p112 = scmp.ne.s32.totalorder %s101, %s104
      %p113 = scmp.eq.s32.totalorder %s28, 1
      %p114 = por %p112, %p113
      %p115 = scmp.ne.s32.totalorder %s104, %s105
      %p116 = scmp.eq.s32.totalorder %s28, 0
      %p117 = por %p115, %p116
      %p118 = scmp.ne.s32.totalorder %s104, %s105
      %p119 = scmp.eq.s32.totalorder %s29, 1
      %p120 = por %p118, %p119
      %p122 = scmp.ne.s32.totalorder %s105, %s121
      %p123 = scmp.eq.s32.totalorder %s29, 0
      %p124 = por %p122, %p123
      %s125 = ssub.s32 %s23, %s30
      %p126 = scmp.eq.s32.totalorder %s125, 0
      %s128 = sadd.s32 %s127, 1
      %s129 = scalar_select %p126, %s127, %s128
      %p132 = pneg %p126
      %p133 = scmp.eq.s32.totalorder %s23, 1
      %p134 = por %p132, %p133
      %p135 = scmp.ne.s32.totalorder %s127, %s130
      %p136 = scmp.eq.s32.totalorder %s23, 0
      %p137 = por %p135, %p136
      %p138 = scmp.ne.s32.totalorder %s127, %s130
      %p139 = scmp.eq.s32.totalorder %s28, 1
      %p140 = por %p138, %p139
      %p141 = scmp.ne.s32.totalorder %s130, %s131
      %p142 = scmp.eq.s32.totalorder %s28, 0
      %p143 = por %p141, %p142
      %p144 = scmp.ne.s32.totalorder %s130, %s131
      %p145 = scmp.eq.s32.totalorder %s29, 1
      %p146 = por %p144, %p145
      %p148 = scmp.ne.s32.totalorder %s131, %s147
      %p149 = scmp.eq.s32.totalorder %s29, 0
      %p150 = por %p148, %p149
      %s151 = ssub.s32 %s23, %s30
      %p152 = scmp.eq.s32.totalorder %s151, 0
      %s154 = sadd.s32 %s153, 1
      %s155 = scalar_select %p152, %s153, %s154
      %p158 = pneg %p152
      %p159 = scmp.eq.s32.totalorder %s23, 1
      %p160 = por %p158, %p159
      %p161 = scmp.ne.s32.totalorder %s153, %s156
      %p162 = scmp.eq.s32.totalorder %s23, 0
      %p163 = por %p161, %p162
      %p164 = scmp.ne.s32.totalorder %s153, %s156
      %p165 = scmp.eq.s32.totalorder %s28, 1
      %p166 = por %p164, %p165
      %p167 = scmp.ne.s32.totalorder %s156, %s157
      %p168 = scmp.eq.s32.totalorder %s28, 0
      %p169 = por %p167, %p168
      %p170 = scmp.ne.s32.totalorder %s156, %s157
      %p171 = scmp.eq.s32.totalorder %s29, 1
      %p172 = por %p170, %p171
      %p174 = scmp.ne.s32.totalorder %s157, %s173
      %p175 = scmp.eq.s32.totalorder %s29, 0
      %p176 = por %p174, %p175
      %s177 = ssub.s32 %s23, %s30
      %p178 = scmp.eq.s32.totalorder %s177, 0
      %s180 = sadd.s32 %s179, 1
      %s181 = scalar_select %p178, %s179, %s180
      %p184 = pneg %p178
      %p185 = scmp.eq.s32.totalorder %s23, 1
      %p186 = por %p184, %p185
      %p187 = scmp.ne.s32.totalorder %s179, %s182
      %p188 = scmp.eq.s32.totalorder %s23, 0
      %p189 = por %p187, %p188
      %p190 = scmp.ne.s32.totalorder %s179, %s182
      %p191 = scmp.eq.s32.totalorder %s28, 1
      %p192 = por %p190, %p191
      %p193 = scmp.ne.s32.totalorder %s182, %s183
      %p194 = scmp.eq.s32.totalorder %s28, 0
      %p195 = por %p193, %p194
      %p196 = scmp.ne.s32.totalorder %s182, %s183
      %p197 = scmp.eq.s32.totalorder %s29, 1
      %p198 = por %p196, %p197
      %p200 = scmp.ne.s32.totalorder %s183, %s199
      %p201 = scmp.eq.s32.totalorder %s29, 0
      %p202 = por %p200, %p201
      %s203 = ssub.s32 %s23, %s30
      %p204 = scmp.eq.s32.totalorder %s203, 0
      %s206 = sadd.s32 %s205, 1
      %s207 = scalar_select %p204, %s205, %s206
      %p210 = pneg %p204
      %p211 = scmp.eq.s32.totalorder %s23, 1
      %p212 = por %p210, %p211
      %p213 = scmp.ne.s32.totalorder %s205, %s208
      %p214 = scmp.eq.s32.totalorder %s23, 0
      %p215 = por %p213, %p214
      %p216 = scmp.ne.s32.totalorder %s205, %s208
      %p217 = scmp.eq.s32.totalorder %s28, 1
      %p218 = por %p216, %p217
      %p219 = scmp.ne.s32.totalorder %s208, %s209
      %p220 = scmp.eq.s32.totalorder %s28, 0
      %p221 = por %p219, %p220
      %p222 = scmp.ne.s32.totalorder %s208, %s209
      %p223 = scmp.eq.s32.totalorder %s29, 1
      %p224 = por %p222, %p223
      %p226 = scmp.ne.s32.totalorder %s209, %s225
      %p227 = scmp.eq.s32.totalorder %s29, 0
      %p228 = por %p226, %p227
      %s229 = ssub.s32 %s23, %s30
      %p230 = scmp.eq.s32.totalorder %s229, 0
      %s232 = sadd.s32 %s231, 1
      %s233 = scalar_select %p230, %s231, %s232
      %p236 = pneg %p230
      %p237 = scmp.eq.s32.totalorder %s23, 1
      %p238 = por %p236, %p237
      %p239 = scmp.ne.s32.totalorder %s231, %s234
      %p240 = scmp.eq.s32.totalorder %s23, 0
      %p241 = por %p239, %p240
      %p242 = scmp.ne.s32.totalorder %s231, %s234
      %p243 = scmp.eq.s32.totalorder %s28, 1
      %p244 = por %p242, %p243
      %p245 = scmp.ne.s32.totalorder %s234, %s235
      %p246 = scmp.eq.s32.totalorder %s28, 0
      %p247 = por %p245, %p246
      %p248 = scmp.ne.s32.totalorder %s234, %s235
      %p249 = scmp.eq.s32.totalorder %s29, 1
      %p250 = por %p248, %p249
      %p252 = scmp.ne.s32.totalorder %s235, %s251
      %p253 = scmp.eq.s32.totalorder %s29, 0
      %p254 = por %p252, %p253
      %s255 = ssub.s32 %s23, %s30
      %p256 = scmp.eq.s32.totalorder %s255, 0
      %s258 = sadd.s32 %s257, 1
      %s259 = scalar_select %p256, %s257, %s258
      %p262 = pneg %p256
      %p263 = scmp.eq.s32.totalorder %s23, 1
      %p264 = por %p262, %p263
      %p265 = scmp.ne.s32.totalorder %s257, %s260
      %p266 = scmp.eq.s32.totalorder %s23, 0
      %p267 = por %p265, %p266
      %p268 = scmp.ne.s32.totalorder %s257, %s260
      %p269 = scmp.eq.s32.totalorder %s28, 1
      %p270 = por %p268, %p269
      %p271 = scmp.ne.s32.totalorder %s260, %s261
      %p272 = scmp.eq.s32.totalorder %s28, 0
      %p273 = por %p271, %p272
      %p274 = scmp.ne.s32.totalorder %s260, %s261
      %p275 = scmp.eq.s32.totalorder %s29, 1
      %p276 = por %p274, %p275
      %p278 = scmp.ne.s32.totalorder %s261, %s277
      %p279 = scmp.eq.s32.totalorder %s29, 0
      %p280 = por %p278, %p279
      %s281 = ssub.s32 %s23, %s30
      %p282 = scmp.eq.s32.totalorder %s281, 0
      %s284 = sadd.s32 %s283, 1
      %s285 = scalar_select %p282, %s283, %s284
      %p288 = pneg %p282
      %p289 = scmp.eq.s32.totalorder %s23, 1
      %p290 = por %p288, %p289
      %p291 = scmp.ne.s32.totalorder %s283, %s286
      %p292 = scmp.eq.s32.totalorder %s23, 0
      %p293 = por %p291, %p292
      %p294 = scmp.ne.s32.totalorder %s283, %s286
      %p295 = scmp.eq.s32.totalorder %s28, 1
      %p296 = por %p294, %p295
      %p297 = scmp.ne.s32.totalorder %s286, %s287
      %p298 = scmp.eq.s32.totalorder %s28, 0
      %p299 = por %p297, %p298
      %p300 = scmp.ne.s32.totalorder %s286, %s287
      %p301 = scmp.eq.s32.totalorder %s29, 1
      %p302 = por %p300, %p301
      %p304 = scmp.ne.s32.totalorder %s287, %s303
      %p305 = scmp.eq.s32.totalorder %s29, 0
      %p306 = por %p304, %p305
      %s307 = ssub.s32 %s23, %s30
      %p308 = scmp.eq.s32.totalorder %s307, 0
      %s310 = sadd.s32 %s309, 1
      %s311 = scalar_select %p308, %s309, %s310
      %p314 = pneg %p308
      %p315 = scmp.eq.s32.totalorder %s23, 1
      %p316 = por %p314, %p315
      %p317 = scmp.ne.s32.totalorder %s309, %s312
      %p318 = scmp.eq.s32.totalorder %s23, 0
      %p319 = por %p317, %p318
      %p320 = scmp.ne.s32.totalorder %s309, %s312
      %p321 = scmp.eq.s32.totalorder %s28, 1
      %p322 = por %p320, %p321
      %p323 = scmp.ne.s32.totalorder %s312, %s313
      %p324 = scmp.eq.s32.totalorder %s28, 0
      %p325 = por %p323, %p324
      %p326 = scmp.ne.s32.totalorder %s312, %s313
      %p327 = scmp.eq.s32.totalorder %s29, 1
      %p328 = por %p326, %p327
      %p330 = scmp.ne.s32.totalorder %s313, %s329
      %p331 = scmp.eq.s32.totalorder %s29, 0
      %p332 = por %p330, %p331
      %p333 = scmp.le.s32.totalorder 1, %s23
      %p334 = scmp.lt.s32.totalorder %s23, 3
      %p335 = pnand %p333, %p334
      %p336 = pneg %p335
      // Predicated region
      $region9: #{critic_forward.1} parent=5 // pred_check
        _
      $region10: #{critic_forward.1} parent=5 // pred_check_branch
        %338 = sbr.rel (%p335) target = $region12
      $region11: #{critic_forward.1} parent=5 // pred_region
        %s339 = ssub.s32 %s23, 1
        // Predicated region
        $region13: #{critic_forward.1} parent=11 // pred_check
          %p340 = pneg %p44
        $region14: #{critic_forward.1} parent=11 // pred_check_branch
          %342 = sbr.rel (%p340) target = $region16
        $region15: #{critic_forward.1} parent=11 // pred_region
          _
        $region16: #{critic_forward.1} parent=11 // pred_fallthru
          _
        // Predicated region
        $region17: #{critic_forward.1} parent=11 // pred_check
          %p343 = pneg %p65
        $region18: #{critic_forward.1} parent=11 // pred_check_branch
          %345 = sbr.rel (%p343) target = $region20
        $region19: #{critic_forward.1} parent=11 // pred_region
          _
        $region20: #{critic_forward.1} parent=11 // pred_fallthru
          _
      $region12: #{critic_forward.1} parent=5 // pred_fallthru
        _
      %p346 = scmp.lt.s32.totalorder %s23, 2
      // Predicated region
      $region21: #{critic_forward.1} parent=5 // pred_check
        %p347 = pneg %p346
      $region22: #{critic_forward.1} parent=5 // pred_check_branch
        %349 = sbr.rel (%p347) target = $region24
      $region23: #{critic_forward.1} parent=5 // pred_region
        // Predicated region
        $region25: #{critic_forward.1} parent=23 // pred_check
          %p350 = pneg %p85
        $region26: #{critic_forward.1} parent=23 // pred_check_branch
          %352 = sbr.rel (%p350) target = $region28
        $region27: #{critic_forward.1} parent=23 // pred_region
          %p353 = scmp.lt.s32.totalorder %s23, 1
          %s354 = scalar_select %p353, %s23, 1
          %s355 = smul.addr %s354, 3
          %s356 = smul.addr %s355, 8
          %s357 = scalar_lea.vmem %s2, %s356
        $region28: #{critic_forward.1} parent=23 // pred_fallthru
          _
        // Predicated region
        $region29: #{critic_forward.1} parent=23 // pred_check
          %p358 = pneg %p111
        $region30: #{critic_forward.1} parent=23 // pred_check_branch
          %360 = sbr.rel (%p358) target = $region32
        $region31: #{critic_forward.1} parent=23 // pred_region
          %p361 = scmp.lt.s32.totalorder %s23, 1
          %s362 = scalar_select %p361, %s23, 1
          %s363 = smul.addr %s362, 4
          %s364 = scalar_lea.vmem %s3, %s363
        $region32: #{critic_forward.1} parent=23 // pred_fallthru
          _
        // Predicated region
        $region33: #{critic_forward.1} parent=23 // pred_check
          %p365 = pneg %p137
        $region34: #{critic_forward.1} parent=23 // pred_check_branch
          %367 = sbr.rel (%p365) target = $region36
        $region35: #{critic_forward.1} parent=23 // pred_region
          %p368 = scmp.lt.s32.totalorder %s23, 1
          %s369 = scalar_select %p368, %s23, 1
          %s370 = scalar_lea.vmem %s4, %s369
        $region36: #{critic_forward.1} parent=23 // pred_fallthru
          _
        // Predicated region
        $region37: #{critic_forward.1} parent=23 // pred_check
          %p371 = pneg %p163
        $region38: #{critic_forward.1} parent=23 // pred_check_branch
          %373 = sbr.rel (%p371) target = $region40
        $region39: #{critic_forward.1} parent=23 // pred_region
          %p374 = scmp.lt.s32.totalorder %s23, 1
          %s375 = scalar_select %p374, %s23, 1
          %s376 = smul.addr %s375, 4
          %s377 = smul.addr %s376, 8
          %s378 = scalar_lea.vmem %s5, %s377
        $region40: #{critic_forward.1} parent=23 // pred_fallthru
          _
        // Predicated region
        $region41: #{critic_forward.1} parent=23 // pred_check
          %p379 = pneg %p189
        $region42: #{critic_forward.1} parent=23 // pred_check_branch
          %381 = sbr.rel (%p379) target = $region44
        $region43: #{critic_forward.1} parent=23 // pred_region
          %p382 = scmp.lt.s32.totalorder %s23, 1
          %s383 = scalar_select %p382, %s23, 1
          %s384 = scalar_lea.vmem %s6, %s383
        $region44: #{critic_forward.1} parent=23 // pred_fallthru
          _
        // Predicated region
        $region45: #{critic_forward.1} parent=23 // pred_check
          %p385 = pneg %p215
        $region46: #{critic_forward.1} parent=23 // pred_check_branch
          %387 = sbr.rel (%p385) target = $region48
        $region47: #{critic_forward.1} parent=23 // pred_region
          %s388 = sand.u32 %s205, 1
          %s389 = scalar_lea.sflag [#allocation3], %s388
          %s390 = sand.u32 %s205, 1
          %s391 = smul.addr %s390, 32
          %s392 = scalar_lea.vmem [#allocation2], %s391
          %s394 = ssub.s32 512, 512
          %395 = vsyncadd %s389, %s394
          %s396 = smul.addr %s23, 4
          %s397 = smul.addr %s396, 128
          %s398 = scalar_lea.hbm %s7, %s397
          %s399 = sshll.u32 %s392, 4
          %s400 = int_to_ptr.vmem [resolvable:$true] %s399
          %405 = dma.hbm_to_vmem [thread:$0]  %s398, 512, %s400, %s389, 128, 128, 8
        $region48: #{critic_forward.1} parent=23 // pred_fallthru
          _
        // Predicated region
        $region49: #{critic_forward.1} parent=23 // pred_check
          %p406 = pneg %p241
        $region50: #{critic_forward.1} parent=23 // pred_check_branch
          %408 = sbr.rel (%p406) target = $region52
        $region51: #{critic_forward.1} parent=23 // pred_region
          %p409 = scmp.lt.s32.totalorder %s23, 1
          %s410 = scalar_select %p409, %s23, 1
          %s411 = scalar_lea.vmem %s8, %s410
        $region52: #{critic_forward.1} parent=23 // pred_fallthru
          _
        // Predicated region
        $region53: #{critic_forward.1} parent=23 // pred_check
          %p412 = pneg %p267
        $region54: #{critic_forward.1} parent=23 // pred_check_branch
          %414 = sbr.rel (%p412) target = $region56
        $region55: #{critic_forward.1} parent=23 // pred_region
          %s415 = sand.u32 %s257, 1
          %s416 = scalar_lea.sflag [#allocation5], %s415
          %s417 = sand.u32 %s257, 1
          %s418 = smul.addr %s417, 32
          %s419 = scalar_lea.vmem [#allocation4], %s418
          %s421 = ssub.s32 512, 512
          %422 = vsyncadd %s416, %s421
          %s423 = smul.addr %s23, 4
          %s424 = smul.addr %s423, 128
          %s425 = scalar_lea.hbm %s9, %s424
          %s426 = sshll.u32 %s419, 4
          %s427 = int_to_ptr.vmem [resolvable:$true] %s426
          %432 = dma.hbm_to_vmem [thread:$0]  %s425, 512, %s427, %s416, 128, 128, 8
        $region56: #{critic_forward.1} parent=23 // pred_fallthru
          _
        // Predicated region
        $region57: #{critic_forward.1} parent=23 // pred_check
          %p433 = pneg %p293
        $region58: #{critic_forward.1} parent=23 // pred_check_branch
          %435 = sbr.rel (%p433) target = $region60
        $region59: #{critic_forward.1} parent=23 // pred_region
          %p436 = scmp.lt.s32.totalorder %s23, 1
          %s437 = scalar_select %p436, %s23, 1
          %s438 = scalar_lea.vmem %s10, %s437
        $region60: #{critic_forward.1} parent=23 // pred_fallthru
          _
      $region24: #{critic_forward.1} parent=5 // pred_fallthru
        _
      %p439 = scmp.le.s32.totalorder 1, %s23
      %p440 = scmp.lt.s32.totalorder %s23, 3
      %p441 = pnand %p439, %p440
      %p442 = pneg %p441
      // Predicated region
      $region61: #{critic_forward.1} parent=5 // pred_check
        _
      $region62: #{critic_forward.1} parent=5 // pred_check_branch
        %444 = sbr.rel (%p441) target = $region64
      $region63: #{critic_forward.1} parent=5 // pred_region
        %s445 = ssub.s32 %s23, 1
        %s446 = sand.u32 %s208, 1
        %s447 = scalar_lea.sflag [#allocation3], %s446
        %s448 = sand.u32 %s208, 1
        %s449 = smul.addr %s448, 32
        %s450 = scalar_lea.vmem [#allocation2], %s449
        // Predicated region
        $region65: #{critic_forward.1} parent=63 // pred_check
          %p451 = pneg %p221
        $region66: #{critic_forward.1} parent=63 // pred_check_branch
          %453 = sbr.rel (%p451) target = $region68
        $region67: #{critic_forward.1} parent=63 // pred_region
          %454 = dma.done %s447, 512
        $region68: #{critic_forward.1} parent=63 // pred_fallthru
          _
        %s455 = sand.u32 %s260, 1
        %s456 = scalar_lea.sflag [#allocation5], %s455
        %s457 = sand.u32 %s260, 1
        %s458 = smul.addr %s457, 32
        %s459 = scalar_lea.vmem [#allocation4], %s458
        // Predicated region
        $region69: #{critic_forward.1} parent=63 // pred_check
          %p460 = pneg %p273
        $region70: #{critic_forward.1} parent=63 // pred_check_branch
          %462 = sbr.rel (%p460) target = $region72
        $region71: #{critic_forward.1} parent=63 // pred_region
          %463 = dma.done %s456, 512
        $region72: #{critic_forward.1} parent=63 // pred_fallthru
          _
        %p464 = pneg %p44
        %p465 = pneg %p41
        %p466 = pneg %p65
        %p467 = pneg %p62
        %p468 = scmp.lt.s32.totalorder %s28, 1
        %s469 = scalar_select %p468, %s28, 1
        %s470 = smul.addr %s469, 3
        %s471 = smul.addr %s470, 8
        %s472 = scalar_lea.vmem %s2, %s471
        %p473 = pneg %p91
        %p474 = pneg %p88
        %p475 = scmp.lt.s32.totalorder %s28, 1
        %s476 = scalar_select %p475, %s28, 1
        %s477 = smul.addr %s476, 4
        %s478 = scalar_lea.vmem %s3, %s477
        %p479 = pneg %p117
        %p480 = pneg %p114
        %p481 = scmp.lt.s32.totalorder %s28, 1
        %s482 = scalar_select %p481, %s28, 1
        %s483 = scalar_lea.vmem %s4, %s482
        %p484 = pneg %p143
        %p485 = pneg %p140
        %p486 = scmp.lt.s32.totalorder %s28, 1
        %s487 = scalar_select %p486, %s28, 1
        %s488 = smul.addr %s487, 4
        %s489 = smul.addr %s488, 8
        %s490 = scalar_lea.vmem %s5, %s489
        %p491 = pneg %p169
        %p492 = pneg %p166
        %p493 = scmp.lt.s32.totalorder %s28, 1
        %s494 = scalar_select %p493, %s28, 1
        %s495 = scalar_lea.vmem %s6, %s494
        %p496 = pneg %p195
        %p497 = pneg %p192
        %s498 = sand.u32 %s208, 1
        %s499 = scalar_lea.sflag [#allocation3], %s498
        %s500 = sand.u32 %s208, 1
        %s501 = smul.addr %s500, 32
        %s502 = scalar_lea.vmem [#allocation2], %s501
        %p503 = pneg %p221
        %p504 = pneg %p218
        %p505 = scmp.lt.s32.totalorder %s28, 1
        %s506 = scalar_select %p505, %s28, 1
        %s507 = scalar_lea.vmem %s8, %s506
        %p508 = pneg %p247
        %p509 = pneg %p244
        %s510 = sand.u32 %s260, 1
        %s511 = scalar_lea.sflag [#allocation5], %s510
        %s512 = sand.u32 %s260, 1
        %s513 = smul.addr %s512, 32
        %s514 = scalar_lea.vmem [#allocation4], %s513
        %p515 = pneg %p273
        %p516 = pneg %p270
        %p517 = scmp.lt.s32.totalorder %s28, 1
        %s518 = scalar_select %p517, %s28, 1
        %s519 = scalar_lea.vmem %s10, %s518
        %p520 = pneg %p299
        %p521 = pneg %p296
        %p522 = pneg %p325
        %p523 = pneg %p322
        %p524 = scmp.lt.s32.totalorder %s28, 1
        %s525 = scalar_select %p524, %s28, 1
        %s526 = smul.addr %s525, 2
        %s527 = scalar_lea.vmem %s11, %s526
        %p528 = scmp.lt.s32.totalorder %s28, 1
        %s529 = scalar_select %p528, %s28, 1
        %s530 = smul.addr %s529, 3
        %s531 = smul.addr %s530, 8
        %s532 = scalar_lea.vmem %s2, %s531
        %p533 = scmp.lt.s32.totalorder %s28, 1
        %s534 = scalar_select %p533, %s28, 1
        %s535 = smul.addr %s534, 4
        %s536 = scalar_lea.vmem %s3, %s535
        %p537 = scmp.lt.s32.totalorder %s28, 1
        %s538 = scalar_select %p537, %s28, 1
        %s539 = scalar_lea.vmem %s4, %s538
        %p540 = scmp.lt.s32.totalorder %s28, 1
        %s541 = scalar_select %p540, %s28, 1
        %s542 = smul.addr %s541, 4
        %s543 = smul.addr %s542, 8
        %s544 = scalar_lea.vmem %s5, %s543
        %p545 = scmp.lt.s32.totalorder %s28, 1
        %s546 = scalar_select %p545, %s28, 1
        %s547 = scalar_lea.vmem %s6, %s546
        %p548 = scmp.lt.s32.totalorder %s28, 1
        %s549 = scalar_select %p548, %s28, 1
        %s550 = scalar_lea.vmem %s8, %s549
        %p551 = scmp.lt.s32.totalorder %s28, 1
        %s552 = scalar_select %p551, %s28, 1
        %s553 = scalar_lea.vmem %s10, %s552
        %p554 = scmp.lt.s32.totalorder %s28, 1
        %s555 = scalar_select %p554, %s28, 1
        %s556 = smul.addr %s555, 2
        %s557 = scalar_lea.vmem %s11, %s556
        %v558 = vld [vmem:[%s0] sm:$0x3]
        %v559 = vld [vmem:[%s1] sm:$0x3]
        %v560 = vld [vmem:[%s532] sm:$0xff]
        %v561 = vld [vmem:[%s532 + $0x8] sm:$0xff]
        %v562 = vld [vmem:[%s532 + $0x10] sm:$0x3]
        %v563 = vld [vmem:[%s536] sm:$0xf]
        %vm564 = vcmask 31744
        %v566 = vsel %vm564, %v559, 0
        %vm568 = vcmask 1043456
        %v570 = vsel %vm568, %v563, 0
        %572 = vmatprep.subr.mxu0 0.0
        %573 = vmatpush1.msra.mxu0 %v570
        %574 = vmatprep.subr.mxu0 0.0
        %575 = vmatpush1.msra.mxu0 0.0
        %576 = vmatprep.subr.mxu0 0.0
        %577 = vmatpush1.msra.mxu0 0.0
        %578 = vmatprep.subr.mxu0 0.0
        %579 = vmatpush1.msra.mxu0 0.0
        %580 = vmatprep.subr.mxu0 0.0
        %581 = vmatpush1.msra.mxu0 0.0
        %582 = vmatprep.subr.mxu0 0.0
        %583 = vmatpush1.msra.mxu0 0.0
        %584 = vmatprep.subr.mxu0 0.0
        %585 = vmatpush1.msra.mxu0 0.0
        %586 = vmatprep.subr.mxu0 0.0
        %587 = vmatpush1.msra.mxu0 0.0
        %588 = vmatprep.subr.mxu0 0.0
        %589 = vmatpush1.msra.mxu0 0.0
        %590 = vmatprep.subr.mxu0 0.0
        %591 = vmatpush1.msra.mxu0 0.0
        %592 = vmatprep.subr.mxu0 0.0
        %593 = vmatpush1.msra.mxu0 0.0
        %594 = vmatprep.subr.mxu0 0.0
        %595 = vmatpush1.msra.mxu0 0.0
        %596 = vmatprep.subr.mxu0 0.0
        %597 = vmatpush1.msra.mxu0 0.0
        %598 = vmatprep.subr.mxu0 0.0
        %599 = vmatpush1.msra.mxu0 0.0
        %600 = vmatprep.subr.mxu0 0.0
        %601 = vmatpush1.msra.mxu0 0.0
        %602 = vmatprep.subr.mxu0 0.0
        %603 = vmatpush1.msra.mxu0 0.0
        %604 = vmatprep.subr.mxu0 0.0
        %605 = vmatpush1.msra.mxu0 0.0
        %606 = vmatprep.subr.mxu0 0.0
        %607 = vmatpush1.msra.mxu0 0.0
        %608 = vmatprep.subr.mxu0 0.0
        %609 = vmatpush1.msra.mxu0 0.0
        %610 = vmatprep.subr.mxu0 0.0
        %611 = vmatpush1.msra.mxu0 0.0
        %612 = vmatprep.subr.mxu0 0.0
        %613 = vmatpush1.msra.mxu0 0.0
        %614 = vmatprep.subr.mxu0 0.0
        %615 = vmatpush1.msra.mxu0 0.0
        %616 = vmatprep.subr.mxu0 0.0
        %617 = vmatpush1.msra.mxu0 0.0
        %618 = vmatprep.subr.mxu0 0.0
        %619 = vmatpush1.msra.mxu0 0.0
        %620 = vmatprep.subr.mxu0 0.0
        %621 = vmatpush1.msra.mxu0 0.0
        %622 = vmatprep.subr.mxu0 0.0
        %623 = vmatpush1.msra.mxu0 0.0
        %624 = vmatprep.subr.mxu0 0.0
        %625 = vmatpush1.msra.mxu0 0.0
        %626 = vmatprep.subr.mxu0 0.0
        %627 = vmatpush1.msra.mxu0 0.0
        %628 = vmatprep.subr.mxu0 0.0
        %629 = vmatpush1.msra.mxu0 0.0
        %630 = vmatprep.subr.mxu0 0.0
        %631 = vmatpush1.msra.mxu0 0.0
        %632 = vmatprep.subr.mxu0 0.0
        %633 = vmatpush1.msra.mxu0 0.0
        %634 = vmatprep.subr.mxu0 0.0
        %635 = vmatpush1.msra.mxu0 0.0
        %636 = vmatprep.mubr.f32.mxu0 0.0
        %637 = vmatmul.mubr.f32.gmra.mrb[0].mxu0 %v566
        %v638 = vpop.f32.mrb[0].mxu0
        %v639 = vadd.f32 0.0, %v638
        %v640 = vpop.f32.mrb[0].mxu0
        %641 = vdwg.mxu0
        %vm642 = vcmask 146432
        %v644 = vsel %vm642, %v558, 0
        %vm646 = vcmask 1041408
        %v648 = vsel %vm646, %v562, 0
        %650 = vmatprep.subr.mxu0 0.0
        %651 = vmatpush1.msra.mxu0 %v560
        %652 = vmatprep.subr.mxu0 0.0
        %653 = vmatpush1.msra.mxu0 %v561
        %654 = vmatprep.subr.mxu0 0.0
        %655 = vmatpush1.msra.mxu0 %v648
        %656 = vmatprep.subr.mxu0 0.0
        %657 = vmatpush1.msra.mxu0 0.0
        %658 = vmatprep.subr.mxu0 0.0
        %659 = vmatpush1.msra.mxu0 0.0
        %660 = vmatprep.subr.mxu0 0.0
        %661 = vmatpush1.msra.mxu0 0.0
        %662 = vmatprep.subr.mxu0 0.0
        %663 = vmatpush1.msra.mxu0 0.0
        %664 = vmatprep.subr.mxu0 0.0
        %665 = vmatpush1.msra.mxu0 0.0
        %666 = vmatprep.subr.mxu0 0.0
        %667 = vmatpush1.msra.mxu0 0.0
        %668 = vmatprep.subr.mxu0 0.0
        %669 = vmatpush1.msra.mxu0 0.0
        %670 = vmatprep.subr.mxu0 0.0
        %671 = vmatpush1.msra.mxu0 0.0
        %672 = vmatprep.subr.mxu0 0.0
        %673 = vmatpush1.msra.mxu0 0.0
        %674 = vmatprep.subr.mxu0 0.0
        %675 = vmatpush1.msra.mxu0 0.0
        %676 = vmatprep.subr.mxu0 0.0
        %677 = vmatpush1.msra.mxu0 0.0
        %678 = vmatprep.subr.mxu0 0.0
        %679 = vmatpush1.msra.mxu0 0.0
        %680 = vmatprep.subr.mxu0 0.0
        %681 = vmatpush1.msra.mxu0 0.0
        %682 = vmatprep.subr.mxu0 0.0
        %683 = vmatpush1.msra.mxu0 0.0
        %684 = vmatprep.subr.mxu0 0.0
        %685 = vmatpush1.msra.mxu0 0.0
        %686 = vmatprep.subr.mxu0 0.0
        %687 = vmatpush1.msra.mxu0 0.0
        %688 = vmatprep.subr.mxu0 0.0
        %689 = vmatpush1.msra.mxu0 0.0
        %690 = vmatprep.subr.mxu0 0.0
        %691 = vmatpush1.msra.mxu0 0.0
        %692 = vmatprep.subr.mxu0 0.0
        %693 = vmatpush1.msra.mxu0 0.0
        %694 = vmatprep.subr.mxu0 0.0
        %695 = vmatpush1.msra.mxu0 0.0
        %696 = vmatprep.subr.mxu0 0.0
        %697 = vmatpush1.msra.mxu0 0.0
        %698 = vmatprep.subr.mxu0 0.0
        %699 = vmatpush1.msra.mxu0 0.0
        %700 = vmatprep.subr.mxu0 0.0
        %701 = vmatpush1.msra.mxu0 0.0
        %702 = vmatprep.subr.mxu0 0.0
        %703 = vmatpush1.msra.mxu0 0.0
        %704 = vmatprep.subr.mxu0 0.0
        %705 = vmatpush1.msra.mxu0 0.0
        %706 = vmatprep.subr.mxu0 0.0
        %707 = vmatpush1.msra.mxu0 0.0
        %708 = vmatprep.subr.mxu0 0.0
        %709 = vmatpush1.msra.mxu0 0.0
        %710 = vmatprep.subr.mxu0 0.0
        %711 = vmatpush1.msra.mxu0 0.0
        %712 = vmatprep.subr.mxu0 0.0
        %713 = vmatpush1.msra.mxu0 0.0
        %714 = vmatprep.mubr.f32.mxu0 0.0
        %715 = vmatmul.mubr.f32.gmra.mrb[0].mxu0 %v644
        %v716 = vpop.f32.mrb[0].mxu0
        %v717 = vadd.f32 %v639, %v716
        %v718 = vpop.f32.mrb[0].mxu0
        %719 = vdwg.mxu0
        %v720 = vld [vmem:[%s539] sm:$0x1]
        %v722 = vlaneseq
        %v723 = vshrl.u32 %v722, 7
        %v724 = vsub.s32 0, %v723
        %v725 = vrot.slane %v720, %v724
        %v727 = vadd.f32 %v717, %v725
        %v728 = vmax.f32 %v727, 0.0
        %v729 = vld [vmem:[%s544] sm:$0xff]
        %v730 = vld [vmem:[%s544 + $0x8] sm:$0xff]
        %v731 = vld [vmem:[%s544 + $0x10] sm:$0xff]
        %v732 = vld [vmem:[%s544 + $0x18] sm:$0xff]
        %v733 = vld [vmem:[%s547] sm:$0x1]
        %v735 = vlaneseq
        %v736 = vshrl.u32 %v735, 7
        %v737 = vsub.s32 0, %v736
        %v738 = vrot.slane %v733, %v737
        %vm740 = vcmask 261120
        %v742 = vsel %vm740, %v728, 0
        %744 = vmatprep.subr.mxu0 0.0
        %745 = vmatpush1.msra.mxu0 %v729
        %746 = vmatprep.subr.mxu0 0.0
        %747 = vmatpush1.msra.mxu0 %v730
        %748 = vmatprep.subr.mxu0 0.0
        %749 = vmatpush1.msra.mxu0 %v731
        %750 = vmatprep.subr.mxu0 0.0
        %751 = vmatpush1.msra.mxu0 %v732
        %752 = vmatprep.subr.mxu0 0.0
        %753 = vmatpush1.msra.mxu0 0.0
        %754 = vmatprep.subr.mxu0 0.0
        %755 = vmatpush1.msra.mxu0 0.0
        %756 = vmatprep.subr.mxu0 0.0
        %757 = vmatpush1.msra.mxu0 0.0
        %758 = vmatprep.subr.mxu0 0.0
        %759 = vmatpush1.msra.mxu0 0.0
        %760 = vmatprep.subr.mxu0 0.0
        %761 = vmatpush1.msra.mxu0 0.0
        %762 = vmatprep.subr.mxu0 0.0
        %763 = vmatpush1.msra.mxu0 0.0
        %764 = vmatprep.subr.mxu0 0.0
        %765 = vmatpush1.msra.mxu0 0.0
        %766 = vmatprep.subr.mxu0 0.0
        %767 = vmatpush1.msra.mxu0 0.0
        %768 = vmatprep.subr.mxu0 0.0
        %769 = vmatpush1.msra.mxu0 0.0
        %770 = vmatprep.subr.mxu0 0.0
        %771 = vmatpush1.msra.mxu0 0.0
        %772 = vmatprep.subr.mxu0 0.0
        %773 = vmatpush1.msra.mxu0 0.0
        %774 = vmatprep.subr.mxu0 0.0
        %775 = vmatpush1.msra.mxu0 0.0
        %776 = vmatprep.subr.mxu0 0.0
        %777 = vmatpush1.msra.mxu0 0.0
        %778 = vmatprep.subr.mxu0 0.0
        %779 = vmatpush1.msra.mxu0 0.0
        %780 = vmatprep.subr.mxu0 0.0
        %781 = vmatpush1.msra.mxu0 0.0
        %782 = vmatprep.subr.mxu0 0.0
        %783 = vmatpush1.msra.mxu0 0.0
        %784 = vmatprep.subr.mxu0 0.0
        %785 = vmatpush1.msra.mxu0 0.0
        %786 = vmatprep.subr.mxu0 0.0
        %787 = vmatpush1.msra.mxu0 0.0
        %788 = vmatprep.subr.mxu0 0.0
        %789 = vmatpush1.msra.mxu0 0.0
        %790 = vmatprep.subr.mxu0 0.0
        %791 = vmatpush1.msra.mxu0 0.0
        %792 = vmatprep.subr.mxu0 0.0
        %793 = vmatpush1.msra.mxu0 0.0
        %794 = vmatprep.subr.mxu0 0.0
        %795 = vmatpush1.msra.mxu0 0.0
        %796 = vmatprep.subr.mxu0 0.0
        %797 = vmatpush1.msra.mxu0 0.0
        %798 = vmatprep.subr.mxu0 0.0
        %799 = vmatpush1.msra.mxu0 0.0
        %800 = vmatprep.subr.mxu0 0.0
        %801 = vmatpush1.msra.mxu0 0.0
        %802 = vmatprep.subr.mxu0 0.0
        %803 = vmatpush1.msra.mxu0 0.0
        %804 = vmatprep.subr.mxu0 0.0
        %805 = vmatpush1.msra.mxu0 0.0
        %806 = vmatprep.subr.mxu0 0.0
        %807 = vmatpush1.msra.mxu0 0.0
        %808 = vmatprep.mubr.f32.mxu0 0.0
        %809 = vmatmul.mubr.f32.gmra.mrb[0].mxu0 %v742
        %v810 = vpop.f32.mrb[0].mxu0
        %v811 = vadd.f32 %v738, %v810
        %v812 = vpop.f32.mrb[0].mxu0
        %813 = vdwg.mxu0
        %v814 = vmax.f32 %v811, 0.0
        %v815 = vld [vmem:[%s450] sm:$0xff]
        %v816 = vld [vmem:[%s450 + $0x8] sm:$0xff]
        %v817 = vld [vmem:[%s450 + $0x10] sm:$0xff]
        %v818 = vld [vmem:[%s450 + $0x18] sm:$0xff]
        %v819 = vld [vmem:[%s550] sm:$0x1]
        %v821 = vlaneseq
        %v822 = vshrl.u32 %v821, 7
        %v823 = vsub.s32 0, %v822
        %v824 = vrot.slane %v819, %v823
        %v827 = vsel %vm740, %v814, 0
        %829 = vmatprep.subr.mxu0 0.0
        %830 = vmatpush1.msra.mxu0 %v815
        %831 = vmatprep.subr.mxu0 0.0
        %832 = vmatpush1.msra.mxu0 %v816
        %833 = vmatprep.subr.mxu0 0.0
        %834 = vmatpush1.msra.mxu0 %v817
        %835 = vmatprep.subr.mxu0 0.0
        %836 = vmatpush1.msra.mxu0 %v818
        %837 = vmatprep.subr.mxu0 0.0
        %838 = vmatpush1.msra.mxu0 0.0
        %839 = vmatprep.subr.mxu0 0.0
        %840 = vmatpush1.msra.mxu0 0.0
        %841 = vmatprep.subr.mxu0 0.0
        %842 = vmatpush1.msra.mxu0 0.0
        %843 = vmatprep.subr.mxu0 0.0
        %844 = vmatpush1.msra.mxu0 0.0
        %845 = vmatprep.subr.mxu0 0.0
        %846 = vmatpush1.msra.mxu0 0.0
        %847 = vmatprep.subr.mxu0 0.0
        %848 = vmatpush1.msra.mxu0 0.0
        %849 = vmatprep.subr.mxu0 0.0
        %850 = vmatpush1.msra.mxu0 0.0
        %851 = vmatprep.subr.mxu0 0.0
        %852 = vmatpush1.msra.mxu0 0.0
        %853 = vmatprep.subr.mxu0 0.0
        %854 = vmatpush1.msra.mxu0 0.0
        %855 = vmatprep.subr.mxu0 0.0
        %856 = vmatpush1.msra.mxu0 0.0
        %857 = vmatprep.subr.mxu0 0.0
        %858 = vmatpush1.msra.mxu0 0.0
        %859 = vmatprep.subr.mxu0 0.0
        %860 = vmatpush1.msra.mxu0 0.0
        %861 = vmatprep.subr.mxu0 0.0
        %862 = vmatpush1.msra.mxu0 0.0
        %863 = vmatprep.subr.mxu0 0.0
        %864 = vmatpush1.msra.mxu0 0.0
        %865 = vmatprep.subr.mxu0 0.0
        %866 = vmatpush1.msra.mxu0 0.0
        %867 = vmatprep.subr.mxu0 0.0
        %868 = vmatpush1.msra.mxu0 0.0
        %869 = vmatprep.subr.mxu0 0.0
        %870 = vmatpush1.msra.mxu0 0.0
        %871 = vmatprep.subr.mxu0 0.0
        %872 = vmatpush1.msra.mxu0 0.0
        %873 = vmatprep.subr.mxu0 0.0
        %874 = vmatpush1.msra.mxu0 0.0
        %875 = vmatprep.subr.mxu0 0.0
        %876 = vmatpush1.msra.mxu0 0.0
        %877 = vmatprep.subr.mxu0 0.0
        %878 = vmatpush1.msra.mxu0 0.0
        %879 = vmatprep.subr.mxu0 0.0
        %880 = vmatpush1.msra.mxu0 0.0
        %881 = vmatprep.subr.mxu0 0.0
        %882 = vmatpush1.msra.mxu0 0.0
        %883 = vmatprep.subr.mxu0 0.0
        %884 = vmatpush1.msra.mxu0 0.0
        %885 = vmatprep.subr.mxu0 0.0
        %886 = vmatpush1.msra.mxu0 0.0
        %887 = vmatprep.subr.mxu0 0.0
        %888 = vmatpush1.msra.mxu0 0.0
        %889 = vmatprep.subr.mxu0 0.0
        %890 = vmatpush1.msra.mxu0 0.0
        %891 = vmatprep.subr.mxu0 0.0
        %892 = vmatpush1.msra.mxu0 0.0
        %893 = vmatprep.mubr.f32.mxu0 0.0
        %894 = vmatmul.mubr.f32.gmra.mrb[0].mxu0 %v827
        %v895 = vpop.f32.mrb[0].mxu0
        %v896 = vadd.f32 %v824, %v895
        %v897 = vpop.f32.mrb[0].mxu0
        %898 = vdwg.mxu0
        %v899 = vmax.f32 %v896, 0.0
        %v900 = vld [vmem:[%s459] sm:$0xff]
        %v901 = vld [vmem:[%s459 + $0x8] sm:$0xff]
        %v902 = vld [vmem:[%s459 + $0x10] sm:$0xff]
        %v903 = vld [vmem:[%s459 + $0x18] sm:$0xff]
        %v904 = vld [vmem:[%s553] sm:$0x1]
        %v906 = vlaneseq
        %v907 = vshrl.u32 %v906, 7
        %v908 = vsub.s32 0, %v907
        %v909 = vrot.slane %v904, %v908
        %v912 = vsel %vm740, %v899, 0
        %914 = vmatprep.subr.mxu0 0.0
        %915 = vmatpush1.msra.mxu0 %v900
        %916 = vmatprep.subr.mxu0 0.0
        %917 = vmatpush1.msra.mxu0 %v901
        %918 = vmatprep.subr.mxu0 0.0
        %919 = vmatpush1.msra.mxu0 %v902
        %920 = vmatprep.subr.mxu0 0.0
        %921 = vmatpush1.msra.mxu0 %v903
        %922 = vmatprep.subr.mxu0 0.0
        %923 = vmatpush1.msra.mxu0 0.0
        %924 = vmatprep.subr.mxu0 0.0
        %925 = vmatpush1.msra.mxu0 0.0
        %926 = vmatprep.subr.mxu0 0.0
        %927 = vmatpush1.msra.mxu0 0.0
        %928 = vmatprep.subr.mxu0 0.0
        %929 = vmatpush1.msra.mxu0 0.0
        %930 = vmatprep.subr.mxu0 0.0
        %931 = vmatpush1.msra.mxu0 0.0
        %932 = vmatprep.subr.mxu0 0.0
        %933 = vmatpush1.msra.mxu0 0.0
        %934 = vmatprep.subr.mxu0 0.0
        %935 = vmatpush1.msra.mxu0 0.0
        %936 = vmatprep.subr.mxu0 0.0
        %937 = vmatpush1.msra.mxu0 0.0
        %938 = vmatprep.subr.mxu0 0.0
        %939 = vmatpush1.msra.mxu0 0.0
        %940 = vmatprep.subr.mxu0 0.0
        %941 = vmatpush1.msra.mxu0 0.0
        %942 = vmatprep.subr.mxu0 0.0
        %943 = vmatpush1.msra.mxu0 0.0
        %944 = vmatprep.subr.mxu0 0.0
        %945 = vmatpush1.msra.mxu0 0.0
        %946 = vmatprep.subr.mxu0 0.0
        %947 = vmatpush1.msra.mxu0 0.0
        %948 = vmatprep.subr.mxu0 0.0
        %949 = vmatpush1.msra.mxu0 0.0
        %950 = vmatprep.subr.mxu0 0.0
        %951 = vmatpush1.msra.mxu0 0.0
        %952 = vmatprep.subr.mxu0 0.0
        %953 = vmatpush1.msra.mxu0 0.0
        %954 = vmatprep.subr.mxu0 0.0
        %955 = vmatpush1.msra.mxu0 0.0
        %956 = vmatprep.subr.mxu0 0.0
        %957 = vmatpush1.msra.mxu0 0.0
        %958 = vmatprep.subr.mxu0 0.0
        %959 = vmatpush1.msra.mxu0 0.0
        %960 = vmatprep.subr.mxu0 0.0
        %961 = vmatpush1.msra.mxu0 0.0
        %962 = vmatprep.subr.mxu0 0.0
        %963 = vmatpush1.msra.mxu0 0.0
        %964 = vmatprep.subr.mxu0 0.0
        %965 = vmatpush1.msra.mxu0 0.0
        %966 = vmatprep.subr.mxu0 0.0
        %967 = vmatpush1.msra.mxu0 0.0
        %968 = vmatprep.subr.mxu0 0.0
        %969 = vmatpush1.msra.mxu0 0.0
        %970 = vmatprep.subr.mxu0 0.0
        %971 = vmatpush1.msra.mxu0 0.0
        %972 = vmatprep.subr.mxu0 0.0
        %973 = vmatpush1.msra.mxu0 0.0
        %974 = vmatprep.subr.mxu0 0.0
        %975 = vmatpush1.msra.mxu0 0.0
        %976 = vmatprep.subr.mxu0 0.0
        %977 = vmatpush1.msra.mxu0 0.0
        %978 = vmatprep.mubr.f32.mxu0 0.0
        %979 = vmatmul.mubr.f32.gmra.mrb[0].mxu0 %v912
        %v980 = vpop.f32.mrb[0].mxu0
        %v981 = vadd.f32 %v909, %v980
        %v982 = vpop.f32.mrb[0].mxu0
        %983 = vdwg.mxu0
        %984 = vst [vmem:[%s557] sm:$0x3] %v981
        %p985 = scmp.lt.s32.totalorder %s28, 1
        %s986 = scalar_select %p985, %s28, 1
        %s987 = smul.addr %s986, 2
        %s988 = scalar_lea.vmem %s11, %s987
        // Predicated region
        $region73: #{critic_forward.1} parent=63 // pred_check
          %p989 = pneg %p322
        $region74: #{critic_forward.1} parent=63 // pred_check_branch
          %991 = sbr.rel (%p989) target = $region76
        $region75: #{critic_forward.1} parent=63 // pred_region
          _
        $region76: #{critic_forward.1} parent=63 // pred_fallthru
          _
      $region64: #{critic_forward.1} parent=5 // pred_fallthru
        _
      %p992 = scmp.le.s32.totalorder 2, %s23
      // Predicated region
      $region77: #{critic_forward.1} parent=5 // pred_check
        %p993 = pneg %p992
      $region78: #{critic_forward.1} parent=5 // pred_check_branch
        %995 = sbr.rel (%p993) target = $region80
      $region79: #{critic_forward.1} parent=5 // pred_region
        %s996 = ssub.s32 %s23, 2
        // Predicated region
        $region81: #{critic_forward.1} parent=79 // pred_check
          %p997 = pneg %p328
        $region82: #{critic_forward.1} parent=79 // pred_check_branch
          %999 = sbr.rel (%p997) target = $region84
        $region83: #{critic_forward.1} parent=79 // pred_region
          %p1000 = scmp.lt.s32.totalorder %s29, 1
          %s1001 = scalar_select %p1000, %s29, 1
          %s1002 = smul.addr %s1001, 2
          %s1003 = scalar_lea.vmem %s11, %s1002
        $region84: #{critic_forward.1} parent=79 // pred_fallthru
          _
      $region80: #{critic_forward.1} parent=5 // pred_fallthru
        _
    $region6: #{critic_forward.1} parent=1 // loop_footer
      %s27 = sadd.s32 1, %s23
    $region7: #{critic_forward.1} parent=1 // loop_footer_branch
      %22 = sbr.rel target = $region3
    $region8: #{critic_forward.1} parent=1 // loop_exit
      _
    %1004 = vsyncpa [#allocation3], 1
    %s1005 = scalar_lea.sflag [#allocation3], 1
    %1006 = vsyncpa %s1005, 1
    %1007 = vsyncpa [#allocation5], 1
    %s1008 = scalar_lea.sflag [#allocation5], 1
    %1009 = vsyncpa %s1008, 1

</llo_original>
